<compile_context>
chip_gen: v7x
topology: tpu7x:2x2x1
jax: 0.10.0
libtpu: 0.0.40
codegen_flags: <defaults>
</compile_context>

<pallas_src>
import jax
import jax.numpy as jnp
from jax import lax
from jax.experimental import pallas as pl
from jax.experimental.pallas import tpu as pltpu

EPS = 1e-8


def _round_up(v, m):
    return (v + m - 1) // m * m


def _make_kernel(n_true, c, num_tiles, eps):
    def kernel(x_ref, out_ref, g_acc, s_acc, ss_acc):
        n = pl.program_id(0)

        @pl.when(n == 0)
        def _init():
            g_acc[...] = jnp.zeros_like(g_acc)
            s_acc[...] = jnp.zeros_like(s_acc)
            ss_acc[...] = jnp.zeros_like(ss_acc)

        x = x_ref[...]                        # (TN, C) in input dtype (f32/bf16)
        xf = x.astype(jnp.float32)

        # Gram accumulation on the MXU; bf16 tiles go straight in, f32 accumulate.
        g_acc[...] += lax.dot_general(
            x, x,
            dimension_numbers=(((0,), (0,)), ((), ())),
            preferred_element_type=jnp.float32,
        )
        # Column sums / sums of squares (for mean and unbiased variance).
        s_acc[...] += jnp.sum(xf, axis=0, keepdims=True)
        ss_acc[...] += jnp.sum(xf * xf, axis=0, keepdims=True)

        @pl.when(n == num_tiles - 1)
        def _finalize():
            nf = jnp.float32(n_true)
            nm1 = jnp.float32(n_true - 1)

            g = g_acc[...]                    # (C, C)  sum_i x_ij x_ik
            s = s_acc[...]                    # (1, C)  sum_i x_ij
            ss = ss_acc[...]                  # (1, C)  sum_i x_ij^2

            var = (ss - s * s / nf) / nm1                 # unbiased variance
            std = jnp.sqrt(jnp.maximum(var, 0.0))
            inv = 1.0 / (jnp.float32(eps) + std)          # (1, C)

            s_col = jnp.transpose(s)                      # (C, 1)
            inv_col = jnp.transpose(inv)                  # (C, 1)

            gc = g - s_col * s / nf                       # centered gram (C, C)
            corr = gc * (inv_col * inv) / nm1             # correlation matrix

            # Analytic off-diagonal mean: subtract the diagonal contribution,
            # where diag(corr)_j = var_j / (eps + std_j)^2.
            diag = var * inv * inv                        # (1, C)
            total_sq = jnp.sum(corr * corr)
            diag_sq = jnp.sum(diag * diag)
            loss = (total_sq - diag_sq) / jnp.float32(c * (c - 1))
            out_ref[0, 0] = loss

    return kernel


def feddecorr_loss(x, *, tile_n=256):
    """Pallas implementation of FedDecorrLoss.forward. x: (N, C)."""
    N, C = x.shape
    if N == 1:
        # PyTorch returns the python float 0.0 in this case.
        return jnp.float32(0.0)

    if x.dtype not in (jnp.float32, jnp.bfloat16):
        x = x.astype(jnp.float32)

    # Row tile: multiple of the sublane packing; zero-pad N so every tile is full
    # (zero rows contribute nothing to G, s, ss — exact).
    row_align = 16 if x.dtype == jnp.bfloat16 else 8
    TN = min(_round_up(tile_n, row_align), _round_up(N, row_align))
    n_pad = _round_up(N, TN)
    if n_pad != N:
        x = jnp.pad(x, ((0, n_pad - N), (0, 0)))
    num_tiles = n_pad // TN

    # Explicit scoped-VMEM budget: 2x double-buffered input tile + accumulators.
    itemsize = x.dtype.itemsize
    vmem_need = 2 * TN * C * itemsize + (C * C + 2 * C) * 4 + (1 << 20)
    vmem_limit = int(min(64 * 1024 * 1024, max(32 * 1024 * 1024, 2 * vmem_need)))

    kernel = _make_kernel(N, C, num_tiles, EPS)

    out = pl.pallas_call(
        kernel,
        out_shape=jax.ShapeDtypeStruct((1, 1), jnp.float32),
        grid_spec=pltpu.PrefetchScalarGridSpec(
            num_scalar_prefetch=0,
            grid=(num_tiles,),
            in_specs=[pl.BlockSpec((TN, C), lambda n: (n, 0))],
            out_specs=pl.BlockSpec((1, 1), lambda n: (0, 0),
                                   memory_space=pltpu.MemorySpace.SMEM),
            scratch_shapes=[
                pltpu.VMEM((C, C), jnp.float32),   # G accumulator
                pltpu.VMEM((1, C), jnp.float32),   # s accumulator
                pltpu.VMEM((1, C), jnp.float32),   # sum-of-squares accumulator
            ],
        ),
        compiler_params=pltpu.CompilerParams(
            dimension_semantics=("arbitrary",),
            vmem_limit_bytes=vmem_limit,
        ),
    )(x)
    return out[0, 0]


def _reference(x):
    """Pure-JAX reference mirroring the torch code (for sanity checking)."""
    N, C = x.shape
    if N == 1:
        return jnp.float32(0.0)
    x = x.astype(jnp.float32)
    xc = x - jnp.mean(x, axis=0, keepdims=True)
    std = jnp.sqrt(jnp.sum(xc * xc, axis=0, keepdims=True) / (N - 1))
    xn = xc / (EPS + std)
    corr = (xn.T @ xn) / (N - 1)
    mask = 1.0 - jnp.eye(C, dtype=jnp.float32)
    return jnp.sum((corr * mask) ** 2) / (C * (C - 1))


if __name__ == "__main__":
    key = jax.random.PRNGKey(0)
    k1, k2 = jax.random.split(key)

    # Primary test: the (N, C) feature-matrix shape the module expects.
    N, C = 8, 32
    x = jax.random.normal(k1, (N, C), dtype=jnp.float32)
    loss = feddecorr_loss(x)
    jax.block_until_ready(loss)
    ref = _reference(x)
    assert jnp.allclose(loss, ref, rtol=2e-4, atol=1e-5), (loss, ref)

    # Exercise the tiled-reduction / zero-padded-last-tile path (3 grid steps).
    x2 = jax.random.normal(k2, (40, 32), dtype=jnp.float32)
    loss2 = feddecorr_loss(x2, tile_n=16)
    jax.block_until_ready(loss2)
    ref2 = _reference(x2)
    assert jnp.allclose(loss2, ref2, rtol=2e-4, atol=1e-5), (loss2, ref2)

    print("KERNEL_OK")
</pallas_src>

<mosaic_0001>
module attributes {stable_mosaic.version = 11 : i64} {
  func.func @kernel(%arg0: i32, %arg1: memref<8x32xf32, #tpu.memory_space<vmem>>, %arg2: memref<1x1xf32, #tpu.memory_space<smem>>, %arg3: memref<32x32xf32, #tpu.memory_space<vmem>>, %arg4: memref<1x32xf32, #tpu.memory_space<vmem>>, %arg5: memref<1x32xf32, #tpu.memory_space<vmem>>) attributes {dimension_semantics = [#tpu.dimension_semantics<arbitrary>], iteration_bounds = array<i64: 1>, scalar_prefetch = 0 : i64, scratch_operands = 3 : i64, tpu.core_type = #tpu.core_type<tc>, window_params = [{transform_indices = @transform_0, window_bounds = array<i64: 8, 32>}, {transform_indices = @transform_1, window_bounds = array<i64: 1, 1>}]} {
    %c0_i32 = arith.constant 0 : i32
    %0 = arith.cmpi eq, %arg0, %c0_i32 : i32
    %1 = arith.extui %0 : i1 to i32
    %c0_i32_0 = arith.constant 0 : i32
    %2 = arith.cmpi ne, %1, %c0_i32_0 : i32
    scf.if %2 {
      %cst_18 = arith.constant 0.000000e+00 : f32
      %22 = vector.broadcast %cst_18 : f32 to vector<32x32xf32>
      %c0_19 = arith.constant 0 : index
      %c0_20 = arith.constant 0 : index
      %23 = vector.load %arg3[%c0_19, %c0_20] : memref<32x32xf32, #tpu.memory_space<vmem>>, vector<32x32xf32>
      tpu.vector_store %arg3[%c0_19, %c0_20], %22 {strides = array<i32>} : memref<32x32xf32, #tpu.memory_space<vmem>>, vector<32x32xf32>,
      %cst_21 = arith.constant 0.000000e+00 : f32
      %24 = vector.broadcast %cst_21 : f32 to vector<1x32xf32>
      %c0_22 = arith.constant 0 : index
      %c0_23 = arith.constant 0 : index
      %25 = vector.load %arg4[%c0_22, %c0_23] : memref<1x32xf32, #tpu.memory_space<vmem>>, vector<1x32xf32>
      tpu.vector_store %arg4[%c0_22, %c0_23], %24 {strides = array<i32>} : memref<1x32xf32, #tpu.memory_space<vmem>>, vector<1x32xf32>,
      %cst_24 = arith.constant 0.000000e+00 : f32
      %26 = vector.broadcast %cst_24 : f32 to vector<1x32xf32>
      %c0_25 = arith.constant 0 : index
      %c0_26 = arith.constant 0 : index
      %27 = vector.load %arg5[%c0_25, %c0_26] : memref<1x32xf32, #tpu.memory_space<vmem>>, vector<1x32xf32>
      tpu.vector_store %arg5[%c0_25, %c0_26], %26 {strides = array<i32>} : memref<1x32xf32, #tpu.memory_space<vmem>>, vector<1x32xf32>,
    } else {
    }
    %c0 = arith.constant 0 : index
    %c0_1 = arith.constant 0 : index
    %3 = vector.load %arg1[%c0, %c0_1] : memref<8x32xf32, #tpu.memory_space<vmem>>, vector<8x32xf32>
    %c0_2 = arith.constant 0 : index
    %c0_3 = arith.constant 0 : index
    %4 = vector.load %arg3[%c0_2, %c0_3] : memref<32x32xf32, #tpu.memory_space<vmem>>, vector<32x32xf32>
    %cst = arith.constant dense<0.000000e+00> : vector<32x32xf32>
    %5 = tpu.matmul %3, %3, %cst {dimension_numbers = #tpu.dot_dimension_numbers<[0], [0], [1], [1], [0, 1, 1, 1], [], []>} : vector<8x32xf32>, vector<8x32xf32>, vector<32x32xf32> -> vector<32x32xf32>
    %6 = arith.addf %4, %5 : vector<32x32xf32>
    %c0_4 = arith.constant 0 : index
    %c0_5 = arith.constant 0 : index
    %7 = vector.load %arg3[%c0_4, %c0_5] : memref<32x32xf32, #tpu.memory_space<vmem>>, vector<32x32xf32>
    tpu.vector_store %arg3[%c0_4, %c0_5], %6 {strides = array<i32>} : memref<32x32xf32, #tpu.memory_space<vmem>>, vector<32x32xf32>,
    %c0_6 = arith.constant 0 : index
    %c0_7 = arith.constant 0 : index
    %8 = vector.load %arg4[%c0_6, %c0_7] : memref<1x32xf32, #tpu.memory_space<vmem>>, vector<1x32xf32>
    %cst_8 = arith.constant dense<0.000000e+00> : vector<32xf32>
    %9 = vector.multi_reduction <add>, %3, %cst_8 [0] : vector<8x32xf32> to vector<32xf32>
    %10 = vector.shape_cast %9 : vector<32xf32> to vector<1x32xf32>
    %11 = arith.addf %8, %10 : vector<1x32xf32>
    %c0_9 = arith.constant 0 : index
    %c0_10 = arith.constant 0 : index
    %12 = vector.load %arg4[%c0_9, %c0_10] : memref<1x32xf32, #tpu.memory_space<vmem>>, vector<1x32xf32>
    tpu.vector_store %arg4[%c0_9, %c0_10], %11 {strides = array<i32>} : memref<1x32xf32, #tpu.memory_space<vmem>>, vector<1x32xf32>,
    %c0_11 = arith.constant 0 : index
    %c0_12 = arith.constant 0 : index
    %13 = vector.load %arg5[%c0_11, %c0_12] : memref<1x32xf32, #tpu.memory_space<vmem>>, vector<1x32xf32>
    %14 = arith.mulf %3, %3 : vector<8x32xf32>
    %cst_13 = arith.constant dense<0.000000e+00> : vector<32xf32>
    %15 = vector.multi_reduction <add>, %14, %cst_13 [0] : vector<8x32xf32> to vector<32xf32>
    %16 = vector.shape_cast %15 : vector<32xf32> to vector<1x32xf32>
    %17 = arith.addf %13, %16 : vector<1x32xf32>
    %c0_14 = arith.constant 0 : index
    %c0_15 = arith.constant 0 : index
    %18 = vector.load %arg5[%c0_14, %c0_15] : memref<1x32xf32, #tpu.memory_space<vmem>>, vector<1x32xf32>
    tpu.vector_store %arg5[%c0_14, %c0_15], %17 {strides = array<i32>} : memref<1x32xf32, #tpu.memory_space<vmem>>, vector<1x32xf32>,
    %c0_i32_16 = arith.constant 0 : i32
    %19 = arith.cmpi eq, %arg0, %c0_i32_16 : i32
    %20 = arith.extui %19 : i1 to i32
    %c0_i32_17 = arith.constant 0 : i32
    %21 = arith.cmpi ne, %20, %c0_i32_17 : i32
    scf.if %21 {
      %c0_18 = arith.constant 0 : index
      %c0_19 = arith.constant 0 : index
      %22 = vector.load %arg3[%c0_18, %c0_19] : memref<32x32xf32, #tpu.memory_space<vmem>>, vector<32x32xf32>
      %c0_20 = arith.constant 0 : index
      %c0_21 = arith.constant 0 : index
      %23 = vector.load %arg4[%c0_20, %c0_21] : memref<1x32xf32, #tpu.memory_space<vmem>>, vector<1x32xf32>
      %c0_22 = arith.constant 0 : index
      %c0_23 = arith.constant 0 : index
      %24 = vector.load %arg5[%c0_22, %c0_23] : memref<1x32xf32, #tpu.memory_space<vmem>>, vector<1x32xf32>
      %25 = arith.mulf %23, %23 : vector<1x32xf32>
      %cst_24 = arith.constant 8.000000e+00 : f32
      %26 = vector.broadcast %cst_24 : f32 to vector<1x32xf32>
      %27 = arith.divf %25, %26 : vector<1x32xf32>
      %28 = arith.subf %24, %27 : vector<1x32xf32>
      %cst_25 = arith.constant 7.000000e+00 : f32
      %29 = vector.broadcast %cst_25 : f32 to vector<1x32xf32>
      %30 = arith.divf %28, %29 : vector<1x32xf32>
      %cst_26 = arith.constant 0.000000e+00 : f32
      %31 = vector.broadcast %cst_26 : f32 to vector<1x32xf32>
      %32 = arith.maximumf %30, %31 : vector<1x32xf32>
      %33 = math.sqrt %32 : vector<1x32xf32>
      %cst_27 = arith.constant 9.99999993E-9 : f32
      %34 = vector.broadcast %cst_27 : f32 to vector<1x32xf32>
      %35 = arith.addf %34, %33 : vector<1x32xf32>
      %cst_28 = arith.constant 1.000000e+00 : f32
      %36 = vector.broadcast %cst_28 : f32 to vector<1x32xf32>
      %37 = arith.divf %36, %35 : vector<1x32xf32>
      %38 = tpu.transpose %23, [1, 0] : vector<1x32xf32> -> vector<32x1xf32>
      %39 = tpu.transpose %37, [1, 0] : vector<1x32xf32> -> vector<32x1xf32>
      %40 = vector.broadcast %38 : vector<32x1xf32> to vector<32x32xf32>
      %41 = vector.broadcast %23 : vector<1x32xf32> to vector<32x32xf32>
      %42 = arith.mulf %40, %41 : vector<32x32xf32>
      %cst_29 = arith.constant 8.000000e+00 : f32
      %43 = vector.broadcast %cst_29 : f32 to vector<32x32xf32>
      %44 = arith.divf %42, %43 : vector<32x32xf32>
      %45 = arith.subf %22, %44 : vector<32x32xf32>
      %46 = vector.broadcast %39 : vector<32x1xf32> to vector<32x32xf32>
      %47 = vector.broadcast %37 : vector<1x32xf32> to vector<32x32xf32>
      %48 = arith.mulf %46, %47 : vector<32x32xf32>
      %49 = arith.mulf %45, %48 : vector<32x32xf32>
      %cst_30 = arith.constant 7.000000e+00 : f32
      %50 = vector.broadcast %cst_30 : f32 to vector<32x32xf32>
      %51 = arith.divf %49, %50 : vector<32x32xf32>
      %52 = arith.mulf %30, %37 : vector<1x32xf32>
      %53 = arith.mulf %52, %37 : vector<1x32xf32>
      %54 = arith.mulf %51, %51 : vector<32x32xf32>
      %55 = vector.shape_cast %54 : vector<32x32xf32> to vector<1x32x32xf32>
      %cst_31 = arith.constant dense<0.000000e+00> : vector<1xf32>
      %56 = vector.multi_reduction <add>, %55, %cst_31 [1, 2] : vector<1x32x32xf32> to vector<1xf32>
      %57 = vector.shape_cast %56 : vector<1xf32> to vector<1x1x1xf32>
      %58 = vector.extract %57[0, 0, 0] : f32 from vector<1x1x1xf32>
      %59 = arith.mulf %53, %53 : vector<1x32xf32>
      %60 = vector.shape_cast %59 : vector<1x32xf32> to vector<1x1x32xf32>
      %cst_32 = arith.constant dense<0.000000e+00> : vector<1xf32>
      %61 = vector.multi_reduction <add>, %60, %cst_32 [1, 2] : vector<1x1x32xf32> to vector<1xf32>
      %62 = vector.shape_cast %61 : vector<1xf32> to vector<1x1x1xf32>
      %63 = vector.extract %62[0, 0, 0] : f32 from vector<1x1x1xf32>
      %64 = arith.subf %58, %63 : f32
      %cst_33 = arith.constant 9.920000e+02 : f32
      %65 = arith.divf %64, %cst_33 : f32
      %c0_34 = arith.constant 0 : index
      %c0_35 = arith.constant 0 : index
      %66 = memref.load %arg2[%c0_34, %c0_35] : memref<1x1xf32, #tpu.memory_space<smem>>
      memref.store %65, %arg2[%c0_34, %c0_35] : memref<1x1xf32, #tpu.memory_space<smem>>
    } else {
    }
    return
  }
  func.func @transform_0(%arg0: i32) -> (i32, i32) {
    %c0_i32 = arith.constant 0 : i32
    %c0_i32_0 = arith.constant 0 : i32
    return %arg0, %c0_i32 : i32, i32
  }
  func.func @transform_1(%arg0: i32) -> (i32, i32) {
    %c0_i32 = arith.constant 0 : i32
    %c0_i32_0 = arith.constant 0 : i32
    %c0_i32_1 = arith.constant 0 : i32
    return %c0_i32, %c0_i32_0 : i32, i32
  }
}

</mosaic_0001>

<llo_original>
// kernel: tpu_custom_call.1
$region0: #{tpu_custom_call.1}
  #allocation0 [shape = 'u32[]', space=smem, size = 0x4, offset = 0x4, fixed_abs, tag = 'smem constant byte address 0x4 - core index']
  #allocation1 [shape = 'u32[144,128]{1,0:T(1,128)}', space=vmem, size = 0x12000, scoped, tag = 'internal scratch']
  #allocation2 [shape = 'f32[32,32]{1,0:T(8,128)}', space=vmem, size = 0x4000, scoped, tag = 'scratch operand']
  #allocation3 [shape = 'f32[1,32]{1,0:T(1,128)}', space=vmem, size = 0x200, scoped, tag = 'scratch operand']
  #allocation4 [shape = 'f32[1,32]{1,0:T(1,128)}', space=vmem, size = 0x200, scoped, tag = 'scratch operand']
  %s0 = inlined_call_operand.hbm [shape: f32[8,32], index: 0, kind: input, shape index: {}]
  %s1 = inlined_call_operand.hbm [shape: f32[1,1], index: 1, kind: output, shape index: {}]
  %s2 = sld [smem:[#allocation0]]
  $region26: #{tpu_custom_call.1} parent=0
    _
  %s4 = ssub.s32 1, %s2
  %s5 = scalar_select 0, %s4, %s2
  $region1: #{tpu_custom_call.1} parent=0
    #allocation5 [shape = 'u8[4096]{0}', space=vmem, size = 0x1000, scoped, tag = 'input window, operand 0, single buffered']
    #allocation6 [shape = 's32[1]{0}', space=sflag, size = 0x4, scoped, tag = 'scoped memory for tpu_custom_call.1']
    #allocation7 [shape = 's32[1]{0}', space=sflag, size = 0x4, scoped, tag = 'scoped memory for tpu_custom_call.1']
    #allocation8 [shape = 'u8[512]{0}', space=smem, size = 0x200, scoped, tag = 'output window, operand 0, single buffered']
    %6 = vsyncpa [#allocation6], 0
    %7 = vsyncpa [#allocation7], 0
    // Predicated region
    $region2: #{tpu_custom_call.1} parent=1 // pred_check
      _
    $region3: #{tpu_custom_call.1} parent=1 // pred_check_branch
      %9 = sbr.rel (0) target = $region5
    $region4: #{tpu_custom_call.1} parent=1 // pred_region
      %s11 = ssub.s32 128, 128
      %12 = vsyncadd [#allocation6], %s11
      %s14 = sshll.u32 [#allocation5], 4
      %s15 = int_to_ptr.vmem [resolvable:$true] %s14
      %17 = dma.hbm_to_vmem [thread:$0]  %s0, 128, %s15, [#allocation6]
    $region5: #{tpu_custom_call.1} parent=1 // pred_fallthru
      _
    // Predicated region
    $region6: #{tpu_custom_call.1} parent=1 // pred_check
      _
    $region7: #{tpu_custom_call.1} parent=1 // pred_check_branch
      %19 = sbr.rel (0) target = $region9
    $region8: #{tpu_custom_call.1} parent=1 // pred_region
      %20 = dma.done [#allocation6], 128
    $region9: #{tpu_custom_call.1} parent=1 // pred_fallthru
      _
    %p21 = scmp.eq.s32.totalorder 0, 0
    // Predicated region
    $region10: #{tpu_custom_call.1} parent=1 // pred_check
      %p22 = pneg %p21
    $region11: #{tpu_custom_call.1} parent=1 // pred_check_branch
      %24 = sbr.rel (%p22) target = $region13
    $region12: #{tpu_custom_call.1} parent=1 // pred_region
      %vm25 = vcmask 261120
      %26 = vst.msk [vmem:[#allocation2] sm:$0xff] %vm25, 0.0
      %27 = vst.msk [vmem:[#allocation2 + $0x8] sm:$0xff] %vm25, 0.0
      %28 = vst.msk [vmem:[#allocation2 + $0x10] sm:$0xff] %vm25, 0.0
      %29 = vst.msk [vmem:[#allocation2 + $0x18] sm:$0xff] %vm25, 0.0
      %vm30 = vcmask 253952
      %31 = vst.msk [vmem:[#allocation3] sm:$0x1] %vm30, 0.0
      %32 = vst.msk [vmem:[#allocation4] sm:$0x1] %vm30, 0.0
    $region13: #{tpu_custom_call.1} parent=1 // pred_fallthru
      _
    %v33 = vld [vmem:[#allocation5] sm:$0xff]
    %v34 = vld [vmem:[#allocation2] sm:$0xff]
    %v35 = vld [vmem:[#allocation2 + $0x8] sm:$0xff]
    %v36 = vld [vmem:[#allocation2 + $0x10] sm:$0xff]
    %v37 = vld [vmem:[#allocation2 + $0x18] sm:$0xff]
    %38 = vxpose.xlu0.b32.start [1/16] %v33, 128
    %39 = vxpose.xlu0.b32.cont [2/16] 0.0, 128
    %40 = vxpose.xlu0.b32.cont [3/16] 0.0, 128
    %41 = vxpose.xlu0.b32.cont [4/16] 0.0, 128
    %42 = vxpose.xlu0.b32.cont [5/16] 0.0, 128
    %43 = vxpose.xlu0.b32.cont [6/16] 0.0, 128
    %44 = vxpose.xlu0.b32.cont [7/16] 0.0, 128
    %45 = vxpose.xlu0.b32.cont [8/16] 0.0, 128
    %46 = vxpose.xlu0.b32.cont [9/16] 0.0, 128
    %47 = vxpose.xlu0.b32.cont [10/16] 0.0, 128
    %48 = vxpose.xlu0.b32.cont [11/16] 0.0, 128
    %49 = vxpose.xlu0.b32.cont [12/16] 0.0, 128
    %50 = vxpose.xlu0.b32.cont [13/16] 0.0, 128
    %51 = vxpose.xlu0.b32.cont [14/16] 0.0, 128
    %52 = vxpose.xlu0.b32.cont [15/16] 0.0, 128
    %53 = vxpose.xlu0.b32.end [16/16] 0.0, 128
    %v54 = vpop.trf.xlu0
    %v55 = vpop.trf.xlu0
    %v56 = vpop.trf.xlu0
    %v57 = vpop.trf.xlu0
    %v58 = vpop.trf.xlu0
    %v59 = vpop.trf.xlu0
    %v60 = vpop.trf.xlu0
    %v61 = vpop.trf.xlu0
    %v62 = vpop.trf.xlu0
    %v63 = vpop.trf.xlu0
    %v64 = vpop.trf.xlu0
    %v65 = vpop.trf.xlu0
    %v66 = vpop.trf.xlu0
    %v67 = vpop.trf.xlu0
    %v68 = vpop.trf.xlu0
    %v69 = vpop.trf.xlu0
    %vm70 = vcmask 64512
    %v72 = vsel %vm70, %v54, 0
    %v75 = vsel %vm70, %v55, 0
    %v78 = vsel %vm70, %v56, 0
    %v81 = vsel %vm70, %v57, 0
    %83 = vmatprep.subr.mxu0 0.0
    %84 = vmatpush1.msra.mxu0 %v33
    %85 = vmatprep.subr.mxu0 0.0
    %86 = vmatpush1.msra.mxu0 0.0
    %87 = vmatprep.subr.mxu0 0.0
    %88 = vmatpush1.msra.mxu0 0.0
    %89 = vmatprep.subr.mxu0 0.0
    %90 = vmatpush1.msra.mxu0 0.0
    %91 = vmatprep.subr.mxu0 0.0
    %92 = vmatpush1.msra.mxu0 0.0
    %93 = vmatprep.subr.mxu0 0.0
    %94 = vmatpush1.msra.mxu0 0.0
    %95 = vmatprep.subr.mxu0 0.0
    %96 = vmatpush1.msra.mxu0 0.0
    %97 = vmatprep.subr.mxu0 0.0
    %98 = vmatpush1.msra.mxu0 0.0
    %99 = vmatprep.subr.mxu0 0.0
    %100 = vmatpush1.msra.mxu0 0.0
    %101 = vmatprep.subr.mxu0 0.0
    %102 = vmatpush1.msra.mxu0 0.0
    %103 = vmatprep.subr.mxu0 0.0
    %104 = vmatpush1.msra.mxu0 0.0
    %105 = vmatprep.subr.mxu0 0.0
    %106 = vmatpush1.msra.mxu0 0.0
    %107 = vmatprep.subr.mxu0 0.0
    %108 = vmatpush1.msra.mxu0 0.0
    %109 = vmatprep.subr.mxu0 0.0
    %110 = vmatpush1.msra.mxu0 0.0
    %111 = vmatprep.subr.mxu0 0.0
    %112 = vmatpush1.msra.mxu0 0.0
    %113 = vmatprep.subr.mxu0 0.0
    %114 = vmatpush1.msra.mxu0 0.0
    %115 = vmatprep.subr.mxu0 0.0
    %116 = vmatpush1.msra.mxu0 0.0
    %117 = vmatprep.subr.mxu0 0.0
    %118 = vmatpush1.msra.mxu0 0.0
    %119 = vmatprep.subr.mxu0 0.0
    %120 = vmatpush1.msra.mxu0 0.0
    %121 = vmatprep.subr.mxu0 0.0
    %122 = vmatpush1.msra.mxu0 0.0
    %123 = vmatprep.subr.mxu0 0.0
    %124 = vmatpush1.msra.mxu0 0.0
    %125 = vmatprep.subr.mxu0 0.0
    %126 = vmatpush1.msra.mxu0 0.0
    %127 = vmatprep.subr.mxu0 0.0
    %128 = vmatpush1.msra.mxu0 0.0
    %129 = vmatprep.subr.mxu0 0.0
    %130 = vmatpush1.msra.mxu0 0.0
    %131 = vmatprep.subr.mxu0 0.0
    %132 = vmatpush1.msra.mxu0 0.0
    %133 = vmatprep.subr.mxu0 0.0
    %134 = vmatpush1.msra.mxu0 0.0
    %135 = vmatprep.subr.mxu0 0.0
    %136 = vmatpush1.msra.mxu0 0.0
    %137 = vmatprep.subr.mxu0 0.0
    %138 = vmatpush1.msra.mxu0 0.0
    %139 = vmatprep.subr.mxu0 0.0
    %140 = vmatpush1.msra.mxu0 0.0
    %141 = vmatprep.subr.mxu0 0.0
    %142 = vmatpush1.msra.mxu0 0.0
    %143 = vmatprep.subr.mxu0 0.0
    %144 = vmatpush1.msra.mxu0 0.0
    %145 = vmatprep.subr.mxu0 0.0
    %146 = vmatpush1.msra.mxu0 0.0
    %147 = vmatprep.mubr.f32.mxu0 0.0
    %148 = vmatmul.mubr.f32.gmra.mrb[0].mxu0 %v72
    %v149 = vpop.f32.mrb[0].mxu0
    %v150 = vadd.f32 0.0, %v149
    %v151 = vpop.f32.mrb[0].mxu0
    %152 = vmatprep.mubr.f32.mxu0 0.0
    %153 = vmatmul.mubr.f32.gmra.mrb[0].mxu0 %v75
    %v154 = vpop.f32.mrb[0].mxu0
    %v155 = vadd.f32 0.0, %v154
    %v156 = vpop.f32.mrb[0].mxu0
    %157 = vmatprep.mubr.f32.mxu0 0.0
    %158 = vmatmul.mubr.f32.gmra.mrb[0].mxu0 %v78
    %v159 = vpop.f32.mrb[0].mxu0
    %v160 = vadd.f32 0.0, %v159
    %v161 = vpop.f32.mrb[0].mxu0
    %162 = vmatprep.mubr.f32.mxu0 0.0
    %163 = vmatmul.mubr.f32.gmra.mrb[0].mxu0 %v81
    %v164 = vpop.f32.mrb[0].mxu0
    %v165 = vadd.f32 0.0, %v164
    %v166 = vpop.f32.mrb[0].mxu0
    %167 = vdwg.mxu0
    %v168 = vadd.f32 %v34, %v150
    %v169 = vadd.f32 %v35, %v155
    %v170 = vadd.f32 %v36, %v160
    %v171 = vadd.f32 %v37, %v165
    %vm172 = vcmask 261120
    %173 = vst.msk [vmem:[#allocation2] sm:$0xff] %vm172, %v168
    %174 = vst.msk [vmem:[#allocation2 + $0x8] sm:$0xff] %vm172, %v169
    %175 = vst.msk [vmem:[#allocation2 + $0x10] sm:$0xff] %vm172, %v170
    %176 = vst.msk [vmem:[#allocation2 + $0x18] sm:$0xff] %vm172, %v171
    %v177 = vld [vmem:[#allocation3] sm:$0x1]
    %v178 = vsel %vm172, %v33, 0.0
    %v179 = vrot.slane %v178, 4
    %v180 = vadd.f32 %v178, %v179
    %v181 = vrot.slane %v180, 2
    %v182 = vadd.f32 %v180, %v181
    %v183 = vrot.slane %v182, 1
    %v184 = vadd.f32 %v182, %v183
    %v185 = vadd.f32 %v177, %v184
    %vm186 = vcmask 253952
    %187 = vst.msk [vmem:[#allocation3] sm:$0x1] %vm186, %v185
    %v188 = vld [vmem:[#allocation4] sm:$0x1]
    %v189 = vmul.f32 %v33, %v33
    %v190 = vsel %vm172, %v189, 0.0
    %v191 = vrot.slane %v190, 4
    %v192 = vadd.f32 %v190, %v191
    %v193 = vrot.slane %v192, 2
    %v194 = vadd.f32 %v192, %v193
    %v195 = vrot.slane %v194, 1
    %v196 = vadd.f32 %v194, %v195
    %v197 = vadd.f32 %v188, %v196
    %198 = vst.msk [vmem:[#allocation4] sm:$0x1] %vm186, %v197
    // Predicated region
    $region14: #{tpu_custom_call.1} parent=1 // pred_check
      %p199 = pneg %p21
    $region15: #{tpu_custom_call.1} parent=1 // pred_check_branch
      %201 = sbr.rel (%p199) target = $region17
    $region16: #{tpu_custom_call.1} parent=1 // pred_region
      %v202 = vld [vmem:[#allocation2] sm:$0xff]
      %v203 = vld [vmem:[#allocation2 + $0x8] sm:$0xff]
      %v204 = vld [vmem:[#allocation2 + $0x10] sm:$0xff]
      %v205 = vld [vmem:[#allocation2 + $0x18] sm:$0xff]
      %v206 = vld [vmem:[#allocation3] sm:$0x1]
      %v207 = vld [vmem:[#allocation4] sm:$0x1]
      %v208 = vmul.f32 %v206, %v206
      %v209 = vrcp.pop 8.0
      %v210 = vmul.f32 %v208, %v209
      %v211 = vsub.f32 %v207, %v210
      %v212 = vrcp.pop 7.0
      %v213 = vmul.f32 %v211, %v212
      %v214 = vmax.f32 %v213, 0.0
      %v215 = vrsqrt.pop %v214
      %v216 = vmul.f32 %v214, %v215
      %vm217 = vcmp.eq.f32.partialorder %v214, inf
      %v218 = vsel %vm217, %v214, %v216
      %vm219 = vcmp.eq.f32.partialorder %v214, 0.0
      %v220 = vand.u32 %v214, 2147483648
      %v221 = vsel %vm219, %v220, %v218
      %v222 = vadd.f32 %v221, 1e-08
      %v223 = vrcp.pop %v222
      %v224 = vmul.f32 1.0, %v223
      %225 = vxpose.xlu0.b32.start [1/16] %v206, 128
      %226 = vxpose.xlu0.b32.cont [2/16] 0.0, 128
      %227 = vxpose.xlu0.b32.cont [3/16] 0.0, 128
      %228 = vxpose.xlu0.b32.cont [4/16] 0.0, 128
      %229 = vxpose.xlu0.b32.cont [5/16] 0.0, 128
      %230 = vxpose.xlu0.b32.cont [6/16] 0.0, 128
      %231 = vxpose.xlu0.b32.cont [7/16] 0.0, 128
      %232 = vxpose.xlu0.b32.cont [8/16] 0.0, 128
      %233 = vxpose.xlu0.b32.cont [9/16] 0.0, 128
      %234 = vxpose.xlu0.b32.cont [10/16] 0.0, 128
      %235 = vxpose.xlu0.b32.cont [11/16] 0.0, 128
      %236 = vxpose.xlu0.b32.cont [12/16] 0.0, 128
      %237 = vxpose.xlu0.b32.cont [13/16] 0.0, 128
      %238 = vxpose.xlu0.b32.cont [14/16] 0.0, 128
      %239 = vxpose.xlu0.b32.cont [15/16] 0.0, 128
      %240 = vxpose.xlu0.b32.end [16/16] 0.0, 128
      %v241 = vpop.trf.xlu0
      %v242 = vpop.trf.xlu0
      %v243 = vpop.trf.xlu0
      %v244 = vpop.trf.xlu0
      %v245 = vpop.trf.xlu0
      %v246 = vpop.trf.xlu0
      %v247 = vpop.trf.xlu0
      %v248 = vpop.trf.xlu0
      %v249 = vpop.trf.xlu0
      %v250 = vpop.trf.xlu0
      %v251 = vpop.trf.xlu0
      %v252 = vpop.trf.xlu0
      %v253 = vpop.trf.xlu0
      %v254 = vpop.trf.xlu0
      %v255 = vpop.trf.xlu0
      %v256 = vpop.trf.xlu0
      %257 = vxpose.xlu0.b32.start [1/16] %v224, 128
      %258 = vxpose.xlu0.b32.cont [2/16] 0.0, 128
      %259 = vxpose.xlu0.b32.cont [3/16] 0.0, 128
      %260 = vxpose.xlu0.b32.cont [4/16] 0.0, 128
      %261 = vxpose.xlu0.b32.cont [5/16] 0.0, 128
      %262 = vxpose.xlu0.b32.cont [6/16] 0.0, 128
      %263 = vxpose.xlu0.b32.cont [7/16] 0.0, 128
      %264 = vxpose.xlu0.b32.cont [8/16] 0.0, 128
      %265 = vxpose.xlu0.b32.cont [9/16] 0.0, 128
      %266 = vxpose.xlu0.b32.cont [10/16] 0.0, 128
      %267 = vxpose.xlu0.b32.cont [11/16] 0.0, 128
      %268 = vxpose.xlu0.b32.cont [12/16] 0.0, 128
      %269 = vxpose.xlu0.b32.cont [13/16] 0.0, 128
      %270 = vxpose.xlu0.b32.cont [14/16] 0.0, 128
      %271 = vxpose.xlu0.b32.cont [15/16] 0.0, 128
      %272 = vxpose.xlu0.b32.end [16/16] 0.0, 128
      %v273 = vpop.trf.xlu0
      %v274 = vpop.trf.xlu0
      %v275 = vpop.trf.xlu0
      %v276 = vpop.trf.xlu0
      %v277 = vpop.trf.xlu0
      %v278 = vpop.trf.xlu0
      %v279 = vpop.trf.xlu0
      %v280 = vpop.trf.xlu0
      %v281 = vpop.trf.xlu0
      %v282 = vpop.trf.xlu0
      %v283 = vpop.trf.xlu0
      %v284 = vpop.trf.xlu0
      %v285 = vpop.trf.xlu0
      %v286 = vpop.trf.xlu0
      %v287 = vpop.trf.xlu0
      %v288 = vpop.trf.xlu0
      %290 = vset.pattern.permute.xlu0 0
      %291 = vperm.xlu0 %290, %v241
      %v292 = vpop.permute.xlu0 %291
      %295 = vset.pattern.permute.xlu0 0
      %296 = vperm.xlu0 %295, %v242
      %v297 = vpop.permute.xlu0 %296
      %300 = vset.pattern.permute.xlu0 0
      %301 = vperm.xlu0 %300, %v243
      %v302 = vpop.permute.xlu0 %301
      %305 = vset.pattern.permute.xlu0 0
      %306 = vperm.xlu0 %305, %v244
      %v307 = vpop.permute.xlu0 %306
      %v310 = vlaneseq
      %v311 = vshrl.u32 %v310, 7
      %v312 = vsub.s32 0, %v311
      %v313 = vrot.slane %v206, %v312
      %v315 = vmul.f32 %v292, %v313
      %v316 = vmul.f32 %v297, %v313
      %v317 = vmul.f32 %v302, %v313
      %v318 = vmul.f32 %v307, %v313
      %v319 = vmul.f32 %v315, %v209
      %v320 = vmul.f32 %v316, %v209
      %v321 = vmul.f32 %v317, %v209
      %v322 = vmul.f32 %v318, %v209
      %v323 = vsub.f32 %v202, %v319
      %v324 = vsub.f32 %v203, %v320
      %v325 = vsub.f32 %v204, %v321
      %v326 = vsub.f32 %v205, %v322
      %328 = vset.pattern.permute.xlu0 0
      %329 = vperm.xlu0 %328, %v273
      %v330 = vpop.permute.xlu0 %329
      %333 = vset.pattern.permute.xlu0 0
      %334 = vperm.xlu0 %333, %v274
      %v335 = vpop.permute.xlu0 %334
      %338 = vset.pattern.permute.xlu0 0
      %339 = vperm.xlu0 %338, %v275
      %v340 = vpop.permute.xlu0 %339
      %343 = vset.pattern.permute.xlu0 0
      %344 = vperm.xlu0 %343, %v276
      %v345 = vpop.permute.xlu0 %344
      %v348 = vlaneseq
      %v349 = vshrl.u32 %v348, 7
      %v350 = vsub.s32 0, %v349
      %v351 = vrot.slane %v224, %v350
      %v353 = vmul.f32 %v330, %v351
      %v354 = vmul.f32 %v335, %v351
      %v355 = vmul.f32 %v340, %v351
      %v356 = vmul.f32 %v345, %v351
      %v357 = vmul.f32 %v323, %v353
      %v358 = vmul.f32 %v324, %v354
      %v359 = vmul.f32 %v325, %v355
      %v360 = vmul.f32 %v326, %v356
      %v361 = vmul.f32 %v357, %v212
      %v362 = vmul.f32 %v358, %v212
      %v363 = vmul.f32 %v359, %v212
      %v364 = vmul.f32 %v360, %v212
      %v365 = vmul.f32 %v213, %v224
      %v366 = vmul.f32 %v365, %v224
      %v367 = vmul.f32 %v361, %v361
      %v368 = vmul.f32 %v362, %v362
      %v369 = vmul.f32 %v363, %v363
      %v370 = vmul.f32 %v364, %v364
      %v371 = vsel %vm172, %v367, 0.0
      %v372 = vsel %vm172, %v368, 0.0
      %v373 = vadd.f32 %v371, %v372
      %v374 = vsel %vm172, %v369, 0.0
      %v375 = vadd.f32 %v373, %v374
      %v376 = vsel %vm172, %v370, 0.0
      %v377 = vadd.f32 %v375, %v376
      %378 = vadd.xlane.f32.xlu0 %v377
      %v379 = vpop.xlane.xlu0 %378
      %v380 = vrot.slane %v379, 4
      %v381 = vadd.f32 %v379, %v380
      %v382 = vrot.slane %v381, 2
      %v383 = vadd.f32 %v381, %v382
      %v384 = vrot.slane %v383, 1
      %v385 = vadd.f32 %v383, %v384
      %s386 = vtos %v385
      %v387 = vmul.f32 %v366, %v366
      %v388 = vsel %vm186, %v387, 0.0
      %389 = vadd.xlane.f32.xlu0 %v388
      %v390 = vpop.xlane.xlu0 %389
      %v391 = vrot.slane %v390, 4
      %v392 = vadd.f32 %v390, %v391
      %v393 = vrot.slane %v392, 2
      %v394 = vadd.f32 %v392, %v393
      %v395 = vrot.slane %v394, 1
      %v396 = vadd.f32 %v394, %v395
      %s397 = vtos %v396
      %s398 = ssub.f32 %s386, %s397
      %v399 = vrcp.pop 992.0
      %s400 = vtos %v399
      %s401 = smul.f32 %s398, %s400
      %s402 = scalar_lea.smem [#allocation8], 0
      %403 = sst [smem:[%s402]] %s401
    $region17: #{tpu_custom_call.1} parent=1 // pred_fallthru
      _
    // Predicated region
    $region18: #{tpu_custom_call.1} parent=1 // pred_check
      _
    $region19: #{tpu_custom_call.1} parent=1 // pred_check_branch
      %405 = sbr.rel (0) target = $region21
    $region20: #{tpu_custom_call.1} parent=1 // pred_region
      %s407 = ssub.s32 16, 16
      %408 = vsyncadd [#allocation7], %s407
      %411 = dma.smem_to_hbm [#allocation8], 16, %s1, [#allocation7]
    $region21: #{tpu_custom_call.1} parent=1 // pred_fallthru
      _
    // Predicated region
    $region22: #{tpu_custom_call.1} parent=1 // pred_check
      _
    $region23: #{tpu_custom_call.1} parent=1 // pred_check_branch
      %413 = sbr.rel (0) target = $region25
    $region24: #{tpu_custom_call.1} parent=1 // pred_region
      %414 = dma.done [#allocation7], 16
    $region25: #{tpu_custom_call.1} parent=1 // pred_fallthru
      _
    %415 = sfence
    %416 = vsyncpa [#allocation6], 1
    %417 = vsyncpa [#allocation7], 1

</llo_original>
